<compile_context>
chip_gen: v5e
topology: v5e:2x2
jax: 0.10.0
libtpu: 0.0.40
codegen_flags: <defaults>
</compile_context>

<pallas_src>
import functools

import jax
import jax.numpy as jnp
from jax.experimental import pallas as pl
from jax.experimental.pallas import tpu as pltpu


def _pair(v):
    return (v, v) if isinstance(v, int) else tuple(v)


def _quadruple(v):
    return (v, v, v, v) if isinstance(v, int) else tuple(v)


def _med3(a, b, c):
    """Elementwise middle value of three arrays (4 min/max ops)."""
    return jnp.maximum(jnp.minimum(a, b), jnp.minimum(jnp.maximum(a, b), c))


def _compare_exchange(vals, a, b):
    lo = jnp.minimum(vals[a], vals[b])
    hi = jnp.maximum(vals[a], vals[b])
    vals[a] = lo
    vals[b] = hi


def _median_of(vals):
    """Elementwise median (lower middle, like torch.median) of a list of arrays.

    General kh*kw path: pruned selection sort -- pass i fixes the i-th
    smallest, only the first (kk-1)//2 + 1 passes are needed for the median
    (about half the CEs of a full sort)."""
    kk = len(vals)
    if kk == 1:
        return vals[0]
    m = (kk - 1) // 2
    vals = list(vals)
    for i in range(m + 1):
        for j in range(kk - 1, i, -1):
            _compare_exchange(vals, j - 1, j)
    return vals[m]


def _median3x3_kernel(x_ref, o_ref, *, sh):
    # x_ref: (1, H_pad, W_store + 2) -- B planes packed along lanes + 2 pad cols.
    # o_ref: (1, H_out, W_store)
    x = x_ref[0]
    h_out = o_ref.shape[1]
    w_store = o_ref.shape[2]

    def band(dy):
        if sh == 1:
            return x[dy:dy + h_out, :]
        # In-kernel row decimation: skip rows the stride discards.
        return x[dy:dy + (h_out - 1) * sh + 1:sh, :]

    r0, r1, r2 = band(0), band(1), band(2)

    # Vertical (column) 3-sort, shared by all 3 horizontal window positions:
    # 3 compare-exchanges = 6 min/max ops on full-width arrays.
    a = jnp.minimum(r0, r1)
    b = jnp.maximum(r0, r1)
    b2 = jnp.minimum(b, r2)
    hi = jnp.maximum(b, r2)
    lo = jnp.minimum(a, b2)
    mid = jnp.maximum(a, b2)

    # Horizontal combine (lane shifts are XLU work, overlapping the VALU ops):
    # median9 = med3( max(column mins), med3(column mids), min(column maxes) ).
    lo0, lo1, lo2 = lo[:, 0:w_store], lo[:, 1:w_store + 1], lo[:, 2:w_store + 2]
    mi0, mi1, mi2 = mid[:, 0:w_store], mid[:, 1:w_store + 1], mid[:, 2:w_store + 2]
    hi0, hi1, hi2 = hi[:, 0:w_store], hi[:, 1:w_store + 1], hi[:, 2:w_store + 2]

    max_lo = jnp.maximum(jnp.maximum(lo0, lo1), lo2)
    min_hi = jnp.minimum(jnp.minimum(hi0, hi1), hi2)
    med_mi = _med3(mi0, mi1, mi2)

    o_ref[0] = _med3(max_lo, med_mi, min_hi)


def _median_pool_kernel(x_ref, o_ref, *, kh, kw, sh):
    # General kh*kw path.
    # x_ref: (1, H_pad, W_store + kw - 1); o_ref: (1, H_out, W_store)
    x = x_ref[0]
    h_out = o_ref.shape[1]
    w_store = o_ref.shape[2]

    vals = []
    for dy in range(kh):
        if sh == 1:
            rows = x[dy:dy + h_out, :]
        else:
            rows = x[dy:dy + (h_out - 1) * sh + 1:sh, :]
        for dx in range(kw):
            vals.append(rows[:, dx:dx + w_store])

    o_ref[0] = _median_of(vals)


def median_pool2d(x, kernel_size=3, stride=1, padding=0, same=False):
    """Matches MedianPool2d.forward for NCHW float inputs."""
    kh, kw = _pair(kernel_size)
    sh, sw = _pair(stride)
    n, c, h, w = x.shape

    # ----- padding (reflect), identical to MedianPool2d._padding -----
    if same:
        ph = max(kh - sh, 0) if h % sh == 0 else max(kh - h % sh, 0)
        pw = max(kw - sw, 0) if w % sw == 0 else max(kw - w % sw, 0)
        p_l = pw // 2
        p_r = pw - p_l
        p_t = ph // 2
        p_b = ph - p_t
    else:
        p_l, p_r, p_t, p_b = _quadruple(padding)

    xp = jnp.pad(x, ((0, 0), (0, 0), (p_t, p_b), (p_l, p_r)), mode="reflect")
    hp = h + p_t + p_b
    wp = w + p_l + p_r

    h_out = (hp - kh) // sh + 1
    w_out = (wp - kw) // sw + 1

    nc = n * c
    xf = xp.reshape(nc, hp, wp)
    kk = kh * kw

    # ----- lane-packing factor b (planes packed side-by-side along lanes) ----
    # VMEM cap: keep the worst case (double-buffered blocks + sorted-band
    # intermediates) well under v5e's 16 MiB scoped default, no extra flags.
    # TODO(synk): for very large single planes (e.g. 4K f32) an H-tile with a
    # (kh-1)-row halo would be needed to stay inside v7x's 64 MiB VMEM.
    budget = 12 * (1 << 20)
    per_plane = hp * wp * x.dtype.itemsize
    max_b = max(1, budget // max(1, (kk + 6) * per_plane))
    if wp >= 256:
        b = 1                                    # already lane-dense
    else:
        b = max(1, min(nc, max_b, max(1, 512 // wp)))   # up to ~4 lane groups/step
    steps = -(-nc // b)
    nc_pad = steps * b
    if nc_pad != nc:
        xf = jnp.concatenate(
            [xf, jnp.zeros((nc_pad - nc, hp, wp), xf.dtype)], axis=0)

    # Pack b planes side-by-side along the lane (W) axis, then right-pad by
    # (kw-1) zero columns so the kernel can compute/store full-width rows.
    packed = (xf.reshape(steps, b, hp, wp)
                .transpose(0, 2, 1, 3)
                .reshape(steps, hp, b * wp))
    w_store = b * wp
    if kw > 1:
        packed = jnp.pad(packed, ((0, 0), (0, 0), (0, kw - 1)))
    w_in = w_store + kw - 1

    if (kh, kw) == (3, 3):
        kernel = functools.partial(_median3x3_kernel, sh=sh)
    else:
        kernel = functools.partial(_median_pool_kernel, kh=kh, kw=kw, sh=sh)

    out_packed = pl.pallas_call(
        kernel,
        out_shape=jax.ShapeDtypeStruct((steps, h_out, w_store), x.dtype),
        grid=(steps,),
        in_specs=[pl.BlockSpec((1, hp, w_in), lambda i: (i, 0, 0))],
        out_specs=pl.BlockSpec((1, h_out, w_store), lambda i: (i, 0, 0)),
        compiler_params=pltpu.CompilerParams(dimension_semantics=("parallel",)),
    )(packed)

    # ----- unpack: stripe j of step s holds plane s*b + j -----
    # Column stride (sw > 1) is applied here; stride-1 columns were free to
    # compute since they share vreg lanes.
    if sw == 1:
        planes = [out_packed[:, :, j * wp:j * wp + w_out] for j in range(b)]
    else:
        planes = [out_packed[:, :, j * wp:j * wp + (w_out - 1) * sw + 1:sw]
                  for j in range(b)]
    out = jnp.stack(planes, axis=1).reshape(nc_pad, h_out, w_out)[:nc]
    return out.reshape(n, c, h_out, w_out)


def _reference_median_pool2d(x, kernel_size=3, stride=1, padding=0, same=False):
    """Pure-JAX reference mirroring the PyTorch unfold + median semantics."""
    kh, kw = _pair(kernel_size)
    sh, sw = _pair(stride)
    n, c, h, w = x.shape
    if same:
        ph = max(kh - sh, 0) if h % sh == 0 else max(kh - h % sh, 0)
        pw = max(kw - sw, 0) if w % sw == 0 else max(kw - w % sw, 0)
        p_l = pw // 2
        p_r = pw - p_l
        p_t = ph // 2
        p_b = ph - p_t
    else:
        p_l, p_r, p_t, p_b = _quadruple(padding)
    xp = jnp.pad(x, ((0, 0), (0, 0), (p_t, p_b), (p_l, p_r)), mode="reflect")
    hp = h + p_t + p_b
    wp = w + p_l + p_r
    h_out = (hp - kh) // sh + 1
    w_out = (wp - kw) // sw + 1
    wins = []
    for dy in range(kh):
        for dx in range(kw):
            wins.append(
                xp[:, :, dy:dy + (h_out - 1) * sh + 1:sh,
                      dx:dx + (w_out - 1) * sw + 1:sw]
            )
    stacked = jnp.stack(wins, axis=-1)           # (N, C, H_out, W_out, kh*kw)
    srt = jnp.sort(stacked, axis=-1)
    return srt[..., (kh * kw - 1) // 2]          # torch.median -> lower middle


if __name__ == "__main__":
    key = jax.random.PRNGKey(0)
    x = jax.random.normal(key, (2, 4, 16, 16), dtype=jnp.float32)

    # Default module config: kernel_size=3, stride=1, padding=0, same=False
    out = median_pool2d(x, kernel_size=3, stride=1, padding=0, same=False)
    out = jax.block_until_ready(out)
    assert out.shape == (2, 4, 14, 14), out.shape
    ref = _reference_median_pool2d(x, kernel_size=3, stride=1, padding=0, same=False)
    assert jnp.allclose(out, ref), "kernel result differs from reference"

    # 'same' reflect padding (output shape == input shape)
    out_same = median_pool2d(x, kernel_size=3, stride=1, same=True)
    out_same = jax.block_until_ready(out_same)
    ref_same = _reference_median_pool2d(x, kernel_size=3, stride=1, same=True)
    assert out_same.shape == (2, 4, 16, 16), out_same.shape
    assert jnp.allclose(out_same, ref_same), "'same' padding result differs"

    # Non-square, non-power-of-two plane count (exercises stripe unpacking)
    x2 = jax.random.normal(jax.random.PRNGKey(1), (1, 3, 12, 10), dtype=jnp.float32)
    out2 = jax.block_until_ready(median_pool2d(x2, kernel_size=3, stride=1, same=True))
    ref2 = _reference_median_pool2d(x2, kernel_size=3, stride=1, same=True)
    assert out2.shape == (1, 3, 12, 10), out2.shape
    assert jnp.allclose(out2, ref2), "non-square result differs"

    print("KERNEL_OK")
</pallas_src>

<mosaic_0001>
module attributes {stable_mosaic.version = 11 : i64} {
  func.func @_median3x3_kernel(%arg0: i32, %arg1: memref<1x16x130xf32, #tpu.memory_space<vmem>>, %arg2: memref<1x14x128xf32, #tpu.memory_space<vmem>>) attributes {dimension_semantics = [#tpu.dimension_semantics<parallel>], iteration_bounds = array<i64: 1>, scalar_prefetch = 0 : i64, scratch_operands = 0 : i64, tpu.core_type = #tpu.core_type<tc>, window_params = [{transform_indices = @transform_0, window_bounds = array<i64: 1, 16, 130>}, {transform_indices = @transform_1, window_bounds = array<i64: 1, 14, 128>}]} {
    %c0 = arith.constant 0 : index
    %c0_0 = arith.constant 0 : index
    %c0_1 = arith.constant 0 : index
    %0 = vector.load %arg1[%c0, %c0_0, %c0_1] : memref<1x16x130xf32, #tpu.memory_space<vmem>>, vector<1x16x130xf32>
    %1 = vector.shape_cast %0 : vector<1x16x130xf32> to vector<16x130xf32>
    %2 = vector.extract_strided_slice %1 {offsets = [0, 0], sizes = [14, 130], strides = [1, 1]} : vector<16x130xf32> to vector<14x130xf32>
    %3 = vector.extract_strided_slice %1 {offsets = [1, 0], sizes = [14, 130], strides = [1, 1]} : vector<16x130xf32> to vector<14x130xf32>
    %4 = vector.extract_strided_slice %1 {offsets = [2, 0], sizes = [14, 130], strides = [1, 1]} : vector<16x130xf32> to vector<14x130xf32>
    %5 = arith.minimumf %2, %3 : vector<14x130xf32>
    %6 = arith.maximumf %2, %3 : vector<14x130xf32>
    %7 = arith.minimumf %6, %4 : vector<14x130xf32>
    %8 = arith.maximumf %6, %4 : vector<14x130xf32>
    %9 = arith.minimumf %5, %7 : vector<14x130xf32>
    %10 = arith.maximumf %5, %7 : vector<14x130xf32>
    %11 = vector.extract_strided_slice %9 {offsets = [0, 0], sizes = [14, 128], strides = [1, 1]} : vector<14x130xf32> to vector<14x128xf32>
    %12 = vector.extract_strided_slice %9 {offsets = [0, 1], sizes = [14, 128], strides = [1, 1]} : vector<14x130xf32> to vector<14x128xf32>
    %13 = vector.extract_strided_slice %9 {offsets = [0, 2], sizes = [14, 128], strides = [1, 1]} : vector<14x130xf32> to vector<14x128xf32>
    %14 = vector.extract_strided_slice %10 {offsets = [0, 0], sizes = [14, 128], strides = [1, 1]} : vector<14x130xf32> to vector<14x128xf32>
    %15 = vector.extract_strided_slice %10 {offsets = [0, 1], sizes = [14, 128], strides = [1, 1]} : vector<14x130xf32> to vector<14x128xf32>
    %16 = vector.extract_strided_slice %10 {offsets = [0, 2], sizes = [14, 128], strides = [1, 1]} : vector<14x130xf32> to vector<14x128xf32>
    %17 = vector.extract_strided_slice %8 {offsets = [0, 0], sizes = [14, 128], strides = [1, 1]} : vector<14x130xf32> to vector<14x128xf32>
    %18 = vector.extract_strided_slice %8 {offsets = [0, 1], sizes = [14, 128], strides = [1, 1]} : vector<14x130xf32> to vector<14x128xf32>
    %19 = vector.extract_strided_slice %8 {offsets = [0, 2], sizes = [14, 128], strides = [1, 1]} : vector<14x130xf32> to vector<14x128xf32>
    %20 = arith.maximumf %11, %12 : vector<14x128xf32>
    %21 = arith.maximumf %20, %13 : vector<14x128xf32>
    %22 = arith.minimumf %17, %18 : vector<14x128xf32>
    %23 = arith.minimumf %22, %19 : vector<14x128xf32>
    %24 = arith.minimumf %14, %15 : vector<14x128xf32>
    %25 = arith.maximumf %14, %15 : vector<14x128xf32>
    %26 = arith.minimumf %25, %16 : vector<14x128xf32>
    %27 = arith.maximumf %24, %26 : vector<14x128xf32>
    %28 = arith.minimumf %21, %27 : vector<14x128xf32>
    %29 = arith.maximumf %21, %27 : vector<14x128xf32>
    %30 = arith.minimumf %29, %23 : vector<14x128xf32>
    %31 = arith.maximumf %28, %30 : vector<14x128xf32>
    %c0_2 = arith.constant 0 : index
    %c0_3 = arith.constant 0 : index
    %c0_4 = arith.constant 0 : index
    %32 = vector.load %arg2[%c0_2, %c0_3, %c0_4] : memref<1x14x128xf32, #tpu.memory_space<vmem>>, vector<1x14x128xf32>
    %33 = vector.shape_cast %32 : vector<1x14x128xf32> to vector<14x128xf32>
    %34 = vector.shape_cast %31 : vector<14x128xf32> to vector<1x14x128xf32>
    tpu.vector_store %arg2[%c0_2, %c0_3, %c0_4], %34 {strides = array<i32>} : memref<1x14x128xf32, #tpu.memory_space<vmem>>, vector<1x14x128xf32>,
    return
  }
  func.func @transform_0(%arg0: i32) -> (i32, i32, i32) {
    %c0_i32 = arith.constant 0 : i32
    %c0_i32_0 = arith.constant 0 : i32
    %c0_i32_1 = arith.constant 0 : i32
    return %arg0, %c0_i32, %c0_i32_0 : i32, i32, i32
  }
  func.func @transform_1(%arg0: i32) -> (i32, i32, i32) {
    %c0_i32 = arith.constant 0 : i32
    %c0_i32_0 = arith.constant 0 : i32
    %c0_i32_1 = arith.constant 0 : i32
    return %arg0, %c0_i32, %c0_i32_0 : i32, i32, i32
  }
}

</mosaic_0001>

<llo_original>
// kernel: tpu_custom_call.1
$region0: #{tpu_custom_call.1}
  #allocation0 [shape = 'u32[]', space=smem, size = 0x4, offset = 0x4, fixed_abs, tag = 'smem constant byte address 0x4 - core index']
  #allocation1 [shape = 'u32[72,128]{1,0:T(1,128)}', space=vmem, size = 0x9000, scoped, tag = 'internal scratch']
  %s0 = inlined_call_operand.hbm [shape: f32[1,16,130], index: 0, kind: input, shape index: {}]
  %s1 = inlined_call_operand.vmem [shape: f32[1,14,128], index: 1, kind: output, shape index: {}]
  %s2 = sld [smem:[#allocation0]]
  $region18: #{tpu_custom_call.1} parent=0
    _
  %s4 = ssub.s32 1, %s2
  %s5 = scalar_select 0, %s4, %s2
  $region1: #{tpu_custom_call.1} parent=0
    #allocation2 [shape = 'u8[16384]{0}', space=vmem, size = 0x4000, scoped, tag = 'input window, operand 0, single buffered']
    #allocation3 [shape = 's32[1]{0}', space=sflag, size = 0x4, scoped, tag = 'scoped memory for tpu_custom_call.1']
    %6 = vsyncpa [#allocation3], 0
    // Predicated region
    $region2: #{tpu_custom_call.1} parent=1 // pred_check
      _
    $region3: #{tpu_custom_call.1} parent=1 // pred_check_branch
      %8 = sbr.rel (0) target = $region5
    $region4: #{tpu_custom_call.1} parent=1 // pred_region
      %10 = vsyncadd [#allocation3], 0
      %s11 = sshll.u32 %s0, 4
      %s12 = int_to_ptr.hbm [resolvable:$true] %s11
      %s13 = sshll.u32 [#allocation2], 4
      %s14 = int_to_ptr.vmem [resolvable:$true] %s13
      %19 = dma.hbm_to_vmem [thread:$0]  %s12, 512, %s14, [#allocation3], 256, 256, 16
    $region5: #{tpu_custom_call.1} parent=1 // pred_fallthru
      _
    // Predicated region
    $region6: #{tpu_custom_call.1} parent=1 // pred_check
      _
    $region7: #{tpu_custom_call.1} parent=1 // pred_check_branch
      %21 = sbr.rel (0) target = $region9
    $region8: #{tpu_custom_call.1} parent=1 // pred_region
      %23 = dma.done [#allocation3], 512
    $region9: #{tpu_custom_call.1} parent=1 // pred_fallthru
      _
    %v24 = vld [vmem:[#allocation2] sm:$0xff]
    %v25 = vld [vmem:[#allocation2 + $0x8] sm:$0xff]
    %v26 = vld [vmem:[#allocation2 + $0x10] sm:$0xff]
    %v27 = vld [vmem:[#allocation2 + $0x18] sm:$0xff]
    %vm32 = vcmask 1046528
    %v33 = vrot.slane %v24, 1
    %v34 = vrot.slane %v26, 1
    %v35 = vsel %vm32, %v33, %v34
    %v36 = vrot.slane %v25, 1
    %v37 = vrot.slane %v27, 1
    %v38 = vsel %vm32, %v36, %v37
    %v43 = vmin.f32 %v24, %v35
    %v44 = vmin.f32 %v25, %v38
    %v45 = vmin.f32 %v26, %v34
    %v46 = vmin.f32 %v27, %v37
    %v47 = vmax.f32 %v24, %v35
    %v48 = vmax.f32 %v25, %v38
    %v49 = vmax.f32 %v26, %v34
    %v50 = vmax.f32 %v27, %v37
    %vm51 = vcmask 1045504
    %v52 = vrot.slane %v24, 2
    %v53 = vrot.slane %v26, 2
    %v54 = vsel %vm51, %v52, %v53
    %v55 = vrot.slane %v25, 2
    %v56 = vrot.slane %v27, 2
    %v57 = vsel %vm51, %v55, %v56
    %v62 = vmin.f32 %v47, %v54
    %v63 = vmin.f32 %v48, %v57
    %v64 = vmin.f32 %v49, %v53
    %v65 = vmin.f32 %v50, %v56
    %v66 = vmax.f32 %v47, %v54
    %v67 = vmax.f32 %v48, %v57
    %v68 = vmax.f32 %v49, %v53
    %v69 = vmax.f32 %v50, %v56
    %v70 = vmin.f32 %v43, %v62
    %v71 = vmin.f32 %v44, %v63
    %v72 = vmin.f32 %v45, %v64
    %v73 = vmin.f32 %v46, %v65
    %v74 = vmax.f32 %v43, %v62
    %v75 = vmax.f32 %v44, %v63
    %v76 = vmax.f32 %v45, %v64
    %v77 = vmax.f32 %v46, %v65
    %82 = vrot.lane.b32.xlu0 %v70, 127
    %v83 = vpop.permute.xlu0 %82
    %84 = vrot.lane.b32.xlu0 %v71, 127
    %v85 = vpop.permute.xlu0 %84
    %86 = vrot.lane.b32.xlu0 %v72, 127
    %v87 = vpop.permute.xlu0 %86
    %88 = vrot.lane.b32.xlu0 %v73, 127
    %v89 = vpop.permute.xlu0 %88
    %vm90 = vcmask 1039360
    %v91 = vsel %vm90, %v83, %v85
    %v92 = vsel %vm90, %v87, %v89
    %v95 = vmax.f32 %v70, %v91
    %v96 = vmax.f32 %v72, %v92
    %97 = vrot.lane.b32.xlu0 %v70, 126
    %v98 = vpop.permute.xlu0 %97
    %99 = vrot.lane.b32.xlu0 %v71, 126
    %v100 = vpop.permute.xlu0 %99
    %101 = vrot.lane.b32.xlu0 %v72, 126
    %v102 = vpop.permute.xlu0 %101
    %103 = vrot.lane.b32.xlu0 %v73, 126
    %v104 = vpop.permute.xlu0 %103
    %vm105 = vcmask 1031168
    %v106 = vsel %vm105, %v98, %v100
    %v107 = vsel %vm105, %v102, %v104
    %v110 = vmax.f32 %v95, %v106
    %v111 = vmax.f32 %v96, %v107
    %116 = vrot.lane.b32.xlu0 %v66, 127
    %v117 = vpop.permute.xlu0 %116
    %118 = vrot.lane.b32.xlu0 %v67, 127
    %v119 = vpop.permute.xlu0 %118
    %120 = vrot.lane.b32.xlu0 %v68, 127
    %v121 = vpop.permute.xlu0 %120
    %122 = vrot.lane.b32.xlu0 %v69, 127
    %v123 = vpop.permute.xlu0 %122
    %v124 = vsel %vm90, %v117, %v119
    %v125 = vsel %vm90, %v121, %v123
    %v128 = vmin.f32 %v66, %v124
    %v129 = vmin.f32 %v68, %v125
    %130 = vrot.lane.b32.xlu0 %v66, 126
    %v131 = vpop.permute.xlu0 %130
    %132 = vrot.lane.b32.xlu0 %v67, 126
    %v133 = vpop.permute.xlu0 %132
    %134 = vrot.lane.b32.xlu0 %v68, 126
    %v135 = vpop.permute.xlu0 %134
    %136 = vrot.lane.b32.xlu0 %v69, 126
    %v137 = vpop.permute.xlu0 %136
    %v138 = vsel %vm105, %v131, %v133
    %v139 = vsel %vm105, %v135, %v137
    %v142 = vmin.f32 %v128, %v138
    %v143 = vmin.f32 %v129, %v139
    %148 = vrot.lane.b32.xlu0 %v74, 127
    %v149 = vpop.permute.xlu0 %148
    %150 = vrot.lane.b32.xlu0 %v75, 127
    %v151 = vpop.permute.xlu0 %150
    %152 = vrot.lane.b32.xlu0 %v76, 127
    %v153 = vpop.permute.xlu0 %152
    %154 = vrot.lane.b32.xlu0 %v77, 127
    %v155 = vpop.permute.xlu0 %154
    %v156 = vsel %vm90, %v149, %v151
    %v157 = vsel %vm90, %v153, %v155
    %v160 = vmin.f32 %v74, %v156
    %v161 = vmin.f32 %v76, %v157
    %v162 = vmax.f32 %v74, %v156
    %v163 = vmax.f32 %v76, %v157
    %164 = vrot.lane.b32.xlu0 %v74, 126
    %v165 = vpop.permute.xlu0 %164
    %166 = vrot.lane.b32.xlu0 %v75, 126
    %v167 = vpop.permute.xlu0 %166
    %168 = vrot.lane.b32.xlu0 %v76, 126
    %v169 = vpop.permute.xlu0 %168
    %170 = vrot.lane.b32.xlu0 %v77, 126
    %v171 = vpop.permute.xlu0 %170
    %v172 = vsel %vm105, %v165, %v167
    %v173 = vsel %vm105, %v169, %v171
    %v176 = vmin.f32 %v162, %v172
    %v177 = vmin.f32 %v163, %v173
    %v178 = vmax.f32 %v160, %v176
    %v179 = vmax.f32 %v161, %v177
    %v180 = vmin.f32 %v110, %v178
    %v181 = vmin.f32 %v111, %v179
    %v182 = vmax.f32 %v110, %v178
    %v183 = vmax.f32 %v111, %v179
    %v184 = vmin.f32 %v182, %v142
    %v185 = vmin.f32 %v183, %v143
    %v186 = vmax.f32 %v180, %v184
    %v187 = vmax.f32 %v181, %v185
    %188 = vst [vmem:[%s1] sm:$0xff] %v186
    %189 = vst [vmem:[%s1 + $0x8] sm:$0x3f] %v187
    // Predicated region
    $region10: #{tpu_custom_call.1} parent=1 // pred_check
      _
    $region11: #{tpu_custom_call.1} parent=1 // pred_check_branch
      %191 = sbr.rel (0) target = $region13
    $region12: #{tpu_custom_call.1} parent=1 // pred_region
      _
    $region13: #{tpu_custom_call.1} parent=1 // pred_fallthru
      _
    // Predicated region
    $region14: #{tpu_custom_call.1} parent=1 // pred_check
      _
    $region15: #{tpu_custom_call.1} parent=1 // pred_check_branch
      %193 = sbr.rel (0) target = $region17
    $region16: #{tpu_custom_call.1} parent=1 // pred_region
      _
    $region17: #{tpu_custom_call.1} parent=1 // pred_fallthru
      _
    %194 = vsyncpa [#allocation3], 1

</llo_original>
